<compile_context>
chip_gen: v5e
topology: v5e:2x2
jax: 0.10.0
libtpu: 0.0.40
codegen_flags: <defaults>
</compile_context>

<pallas_src>
import functools

import jax
import jax.numpy as jnp
from jax import lax
from jax.experimental import pallas as pl
from jax.experimental.pallas import tpu as pltpu

LANES = 128
SUBLANES = 8


def _device_params():
    """Per-generation core count, tile cap (rows of 128 lanes) and VMEM budget."""
    kind = ""
    try:
        kind = jax.devices()[0].device_kind.lower()
    except Exception:
        pass
    if "v7" in kind:
        # 2 TensorCores / chip, 64 MiB VMEM/TC, ~3.2 TB/s HBM.
        return dict(cores=2, cap_rows=8192, vmem_budget=48 << 20)
    if "v6" in kind:
        # 1 TC, 128 MiB VMEM, ~1.4 TB/s HBM -> big tiles, tiny per-step overhead.
        return dict(cores=1, cap_rows=16384, vmem_budget=96 << 20)
    if "v5p" in kind or "v4" in kind:
        # Megacore chips: 2 TCs; "parallel" leading axis splits them.
        return dict(cores=2, cap_rows=8192, vmem_budget=96 << 20)
    # v5e & unknown: 1 TC, 128 MiB physical VMEM but 16 MiB default scoped limit.
    return dict(cores=1, cap_rows=4096, vmem_budget=40 << 20)


def _loss_kernel(mask_ref, out_ref, gt_ref, *acc_refs, mape_loss, tile_rows,
                 valid_rows, steps_per_core):
    c = pl.program_id(0)   # "parallel" core-split axis
    i = pl.program_id(1)   # "arbitrary" reduction axis

    @pl.when(i == 0)
    def _():
        for acc in acc_refs:
            acc[...] = jnp.zeros_like(acc)

    # Logical (un-clamped) block id: the index_map clamps the DMA so no
    # out-of-bounds copy is issued; edge/duplicate blocks are masked here.
    block_idx = c * steps_per_core + i
    row0 = block_idx * tile_rows

    def accumulate(keep):
        m = mask_ref[...].astype(jnp.float32)
        o = out_ref[...].astype(jnp.float32)
        g = gt_ref[...].astype(jnp.float32)
        if keep is not None:
            # Edge / duplicated block only: zero invalid rows so stale VMEM
            # contents (possibly nan/inf) cannot leak into the sums.
            m = jnp.where(keep, m, 0.0)
            o = jnp.where(keep, o, 0.0)
            g = jnp.where(keep, g, 0.0)
        if mape_loss:
            diff = jnp.abs(o - g)
            denom = jnp.abs(g) + jnp.abs(o)
            # EUP approx reciprocal instead of an f32 divide: the EUP slot is
            # otherwise idle and the VALU is the binding slot on v7x.
            mape = diff * pl.reciprocal(denom, approx=True)
            # denom >= diff, so the only specials are 0/0 or non-finite inputs;
            # one isfinite check reproduces torch's isnan/isinf filter.
            mape = jnp.where(jnp.isfinite(mape), mape, 0.0)
            w = diff * (1.0 + mape)
            mw = m * w
            # (T,128)->(T/8,8,128) is sublane-aligned (free); axis-0 sum is a
            # chain of VPU vreg adds -- no per-step XLU cross-lane reduce.
            acc_refs[0][...] += w.reshape(-1, SUBLANES, LANES).sum(axis=0)
            acc_refs[1][...] += mw.reshape(-1, SUBLANES, LANES).sum(axis=0)
        else:
            # Faithful to the PyTorch code: BOTH returned losses use (1 - mask).
            d = jnp.abs((1.0 - m) * (o - g))
            acc_refs[0][...] += d.reshape(-1, SUBLANES, LANES).sum(axis=0)

    full_block = row0 + tile_rows <= valid_rows

    @pl.when(full_block)
    def _():
        accumulate(None)   # hot path: no iota / compares / selects

    @pl.when(jnp.logical_not(full_block))
    def _():
        row_ids = row0 + lax.broadcasted_iota(jnp.int32, (tile_rows, LANES), 0)
        accumulate(row_ids < valid_rows)


def _to_slab(x, align_rows):
    """Row-major flatten to a [rows, 128] slab.

    If x.size is a multiple of 128 (and at least one aligned tile) this is a
    pure reshape -> zero extra HBM traffic.  Otherwise zeros are appended
    (they contribute exactly 0 to every accumulated sum).  dtype is preserved;
    the kernel upcasts to f32 in VMEM, so bf16 / int8 0-1 masks and bf16
    output/gt can be streamed directly to cut HBM traffic.
    """
    flat = jnp.ravel(x)
    n = flat.shape[0]
    min_elems = align_rows * LANES
    if n % LANES == 0 and n >= min_elems:
        return flat.reshape(-1, LANES)          # zero-copy path
    # TODO(synk): truly ragged sizes (n % 128 != 0) still pay one pad copy; a
    # fully zero-copy path needs 1-D blocks or blocking over the original
    # trailing dim with element-granularity masking.
    pad = -n % min_elems
    flat = jnp.pad(flat, (0, pad))
    return flat.reshape(-1, LANES)


def inpainting_loss(mask, output, gt, *, mape_loss=True, max_tile_rows=None):
    """JAX/Pallas equivalent of inpaintingtLoss(mape_loss).forward(mask, output, gt)."""
    assert mask.shape == output.shape == gt.shape
    n_elems = int(output.size)  # divisor for torch.mean semantics
    if n_elems == 0:
        nan = jnp.float32(jnp.nan)  # torch.mean of an empty tensor is nan
        return {"l1_loss_hole": nan, "l1_loss_valid": nan}

    dev = _device_params()
    num_cores = dev["cores"]
    cap = dev["cap_rows"] if max_tile_rows is None else int(max_tile_rows)
    budget = dev["vmem_budget"]

    itemsizes = [jnp.dtype(a.dtype).itemsize for a in (mask, output, gt)]
    # Sub-32-bit inputs pack along sublanes -> keep tiles (32,128)-aligned.
    align = 32 if min(itemsizes) < 4 else SUBLANES

    mask_s = _to_slab(mask, align)
    out_s = _to_slab(output, align)
    gt_s = _to_slab(gt, align)
    rows = out_s.shape[0]  # >= align

    # Tile height: as large as possible (amortize the ~0.35us/step grid
    # overhead) while the double-buffered input working set fits the budget.
    bytes_per_row = LANES * sum(itemsizes)
    cap = max(align, cap // align * align)
    cap_by_vmem = max(align, (budget // (2 * bytes_per_row)) // align * align)
    tile_rows = min(cap, cap_by_vmem, rows // align * align)

    total_blocks = pl.cdiv(rows, tile_rows)
    if total_blocks < num_cores:
        num_cores = 1  # avoid a fully-duplicated (wasted-DMA) block
    steps_per_core = pl.cdiv(total_blocks, num_cores)

    def in_idx(c, i):
        # Clamp so overhanging logical blocks never DMA out of bounds; the
        # kernel masks their contribution via the un-clamped block index.
        return (jnp.minimum(c * steps_per_core + i, total_blocks - 1), 0)

    in_spec = pl.BlockSpec((tile_rows, LANES), in_idx)
    acc_spec = pl.BlockSpec((None, SUBLANES, LANES), lambda c, i: (c, 0, 0))
    acc_shape = jax.ShapeDtypeStruct((num_cores, SUBLANES, LANES), jnp.float32)
    n_acc = 2 if mape_loss else 1  # drop the dead accumulator for plain L1

    kernel = functools.partial(
        _loss_kernel, mape_loss=mape_loss, tile_rows=tile_rows,
        valid_rows=rows, steps_per_core=steps_per_core)

    # VMEM limit from the actual double-buffered footprint (+ slack), clamped
    # to the per-generation budget so v7x's 64 MiB is never overcommitted.
    vmem_limit = int(min(max(2 * tile_rows * bytes_per_row + (4 << 20), 32 << 20),
                         budget + (8 << 20)))

    accs = pl.pallas_call(
        kernel,
        out_shape=(acc_shape,) * n_acc,
        grid_spec=pltpu.PrefetchScalarGridSpec(
            num_scalar_prefetch=0,
            grid=(num_cores, steps_per_core),
            in_specs=[in_spec, in_spec, in_spec],
            out_specs=(acc_spec,) * n_acc,
        ),
        # TODO(synk): on v7x, verify in a profile that the leading "parallel"
        # axis is actually sharded across both TensorCores; if one TC idles,
        # switch it to pltpu.CORE_PARALLEL.
        compiler_params=pltpu.CompilerParams(
            dimension_semantics=("parallel", "arbitrary"),
            vmem_limit_bytes=vmem_limit,
        ),
    )(mask_s, out_s, gt_s)

    inv_n = jnp.float32(1.0 / n_elems)
    if mape_loss:
        sum_w = jnp.sum(accs[0])
        sum_mw = jnp.sum(accs[1])
        l1_valid = sum_mw * inv_n
        l1_hole = (sum_w - sum_mw) * inv_n   # sum((1-m)*w) = sum(w) - sum(m*w)
    else:
        s = jnp.sum(accs[0]) * inv_n
        l1_hole = s
        l1_valid = s
    return {"l1_loss_hole": l1_hole, "l1_loss_valid": l1_valid}


def _reference(mask, output, gt, mape_loss):
    """Pure-JAX reference mirroring the PyTorch forward, for verification."""
    mask = mask.astype(jnp.float32)
    output = output.astype(jnp.float32)
    gt = gt.astype(jnp.float32)
    if mape_loss:
        diff = jnp.abs(output - gt)
        mape = diff / (jnp.abs(gt) + jnp.abs(output))
        mape = jnp.where(jnp.isnan(mape) | jnp.isinf(mape), 0.0, mape)
        l1_hole = jnp.mean((1.0 - mask) * diff * (1.0 + mape))
        l1_valid = jnp.mean(mask * diff * (1.0 + mape))
    else:
        l1_hole = jnp.mean(jnp.abs((1.0 - mask) * output - (1.0 - mask) * gt))
        l1_valid = l1_hole
    return {"l1_loss_hole": l1_hole, "l1_loss_valid": l1_valid}


def _check(shape, key, *, mask_dtype=jnp.float32, max_tile_rows=None):
    k1, k2, k3 = jax.random.split(key, 3)
    output = jax.random.normal(k1, shape, dtype=jnp.float32)
    gt = jax.random.normal(k2, shape, dtype=jnp.float32)
    mask_f32 = (jax.random.uniform(k3, shape) > 0.5).astype(jnp.float32)

    # Hit gt == output == 0 at a few positions to exercise the 0/0 -> 0 path.
    output = output.at[0, 0, 0, :4].set(0.0)
    gt = gt.at[0, 0, 0, :4].set(0.0)

    mask_in = mask_f32.astype(mask_dtype)   # exact for a 0/1 mask

    ok = True
    for mape_loss in (True, False):
        res = inpainting_loss(mask_in, output, gt,
                              mape_loss=mape_loss, max_tile_rows=max_tile_rows)
        res = {k: jax.block_until_ready(v) for k, v in res.items()}
        ref = _reference(mask_f32, output, gt, mape_loss)
        for k in ("l1_loss_hole", "l1_loss_valid"):
            # rtol is loosened slightly to cover the EUP approx reciprocal.
            if not jnp.allclose(res[k], ref[k], rtol=2e-3, atol=1e-6):
                ok = False
                print(f"MISMATCH shape={shape} mape_loss={mape_loss} {k}: "
                      f"{res[k]} vs {ref[k]}")
    return ok


if __name__ == "__main__":
    key = jax.random.PRNGKey(0)
    ka, kb = jax.random.split(key)

    ok = True
    # Small NCHW case, bf16 mask stream (narrow-dtype path), auto tiling:
    # single block, duplicated core slot (if any) is clamped + fully masked.
    ok &= _check((2, 4, 16, 16), ka, mask_dtype=jnp.bfloat16)
    # Ragged case with a tiny forced tile: exercises the ragged-size fallback,
    # multiple blocks, partial trailing block (pl.when edge branch) and the
    # block-index clamping / in-kernel row masking.
    ok &= _check((2, 4, 33, 34), kb, mask_dtype=jnp.float32, max_tile_rows=32)

    if ok:
        print("KERNEL_OK")
</pallas_src>

<mosaic_0001>
module attributes {stable_mosaic.version = 11 : i64} {
  func.func @_loss_kernel(%arg0: i32, %arg1: i32, %arg2: memref<32x128xbf16, #tpu.memory_space<vmem>>, %arg3: memref<32x128xf32, #tpu.memory_space<vmem>>, %arg4: memref<32x128xf32, #tpu.memory_space<vmem>>, %arg5: memref<1x8x128xf32, #tpu.memory_space<vmem>>, %arg6: memref<1x8x128xf32, #tpu.memory_space<vmem>>) attributes {dimension_semantics = [#tpu.dimension_semantics<parallel>, #tpu.dimension_semantics<arbitrary>], iteration_bounds = array<i64: 1, 1>, scalar_prefetch = 0 : i64, scratch_operands = 0 : i64, tpu.core_type = #tpu.core_type<tc>, window_params = [{transform_indices = @transform_0, window_bounds = array<i64: 32, 128>}, {transform_indices = @transform_1, window_bounds = array<i64: 32, 128>}, {transform_indices = @transform_2, window_bounds = array<i64: 32, 128>}, {transform_indices = @transform_3, window_bounds = array<i64: 1, 8, 128>}, {transform_indices = @transform_4, window_bounds = array<i64: 1, 8, 128>}]} {
    %c0_i32 = arith.constant 0 : i32
    %0 = arith.cmpi eq, %arg1, %c0_i32 : i32
    %1 = arith.extui %0 : i1 to i32
    %c0_i32_0 = arith.constant 0 : i32
    %2 = arith.cmpi ne, %1, %c0_i32_0 : i32
    scf.if %2 {
      %cst = arith.constant 0.000000e+00 : f32
      %13 = vector.broadcast %cst : f32 to vector<8x128xf32>
      %c0 = arith.constant 0 : index
      %c0_5 = arith.constant 0 : index
      %c0_6 = arith.constant 0 : index
      %14 = vector.load %arg5[%c0, %c0_5, %c0_6] : memref<1x8x128xf32, #tpu.memory_space<vmem>>, vector<1x8x128xf32>
      %15 = vector.shape_cast %14 : vector<1x8x128xf32> to vector<8x128xf32>
      %16 = vector.shape_cast %13 : vector<8x128xf32> to vector<1x8x128xf32>
      tpu.vector_store %arg5[%c0, %c0_5, %c0_6], %16 {strides = array<i32>} : memref<1x8x128xf32, #tpu.memory_space<vmem>>, vector<1x8x128xf32>,
      %cst_7 = arith.constant 0.000000e+00 : f32
      %17 = vector.broadcast %cst_7 : f32 to vector<8x128xf32>
      %c0_8 = arith.constant 0 : index
      %c0_9 = arith.constant 0 : index
      %c0_10 = arith.constant 0 : index
      %18 = vector.load %arg6[%c0_8, %c0_9, %c0_10] : memref<1x8x128xf32, #tpu.memory_space<vmem>>, vector<1x8x128xf32>
      %19 = vector.shape_cast %18 : vector<1x8x128xf32> to vector<8x128xf32>
      %20 = vector.shape_cast %17 : vector<8x128xf32> to vector<1x8x128xf32>
      tpu.vector_store %arg6[%c0_8, %c0_9, %c0_10], %20 {strides = array<i32>} : memref<1x8x128xf32, #tpu.memory_space<vmem>>, vector<1x8x128xf32>,
    } else {
    }
    %c1_i32 = arith.constant 1 : i32
    %3 = arith.muli %arg0, %c1_i32 : i32
    %4 = arith.addi %3, %arg1 : i32
    %c32_i32 = arith.constant 32 : i32
    %5 = arith.muli %4, %c32_i32 : i32
    %c32_i32_1 = arith.constant 32 : i32
    %6 = arith.addi %5, %c32_i32_1 : i32
    %c32_i32_2 = arith.constant 32 : i32
    %7 = arith.cmpi sle, %6, %c32_i32_2 : i32
    %8 = arith.extui %7 : i1 to i32
    %c0_i32_3 = arith.constant 0 : i32
    %9 = arith.cmpi ne, %8, %c0_i32_3 : i32
    scf.if %9 {
      %c0 = arith.constant 0 : index
      %c0_5 = arith.constant 0 : index
      %13 = vector.load %arg2[%c0, %c0_5] : memref<32x128xbf16, #tpu.memory_space<vmem>>, vector<32x128xbf16>
      %14 = arith.extf %13 : vector<32x128xbf16> to vector<32x128xf32>
      %c0_6 = arith.constant 0 : index
      %c0_7 = arith.constant 0 : index
      %15 = vector.load %arg3[%c0_6, %c0_7] : memref<32x128xf32, #tpu.memory_space<vmem>>, vector<32x128xf32>
      %c0_8 = arith.constant 0 : index
      %c0_9 = arith.constant 0 : index
      %16 = vector.load %arg4[%c0_8, %c0_9] : memref<32x128xf32, #tpu.memory_space<vmem>>, vector<32x128xf32>
      %17 = arith.subf %15, %16 : vector<32x128xf32>
      %18 = math.absf %17 : vector<32x128xf32>
      %19 = math.absf %16 : vector<32x128xf32>
      %20 = math.absf %15 : vector<32x128xf32>
      %21 = arith.addf %19, %20 : vector<32x128xf32>
      %22 = tpu.reciprocal %21 {approx = true} : vector<32x128xf32> -> vector<32x128xf32>
      %23 = arith.mulf %18, %22 : vector<32x128xf32>
      %24 = tpu.weird %23 : vector<32x128xf32> -> vector<32x128xi1>
      %cst = arith.constant dense<true> : vector<32x128xi1>
      %25 = arith.xori %24, %cst : vector<32x128xi1>
      %cst_10 = arith.constant 0.000000e+00 : f32
      %26 = vector.broadcast %cst_10 : f32 to vector<32x128xf32>
      %27 = arith.select %25, %23, %26 : vector<32x128xi1>, vector<32x128xf32>
      %cst_11 = arith.constant 1.000000e+00 : f32
      %28 = vector.broadcast %cst_11 : f32 to vector<32x128xf32>
      %29 = arith.addf %28, %27 : vector<32x128xf32>
      %30 = arith.mulf %18, %29 : vector<32x128xf32>
      %31 = arith.mulf %14, %30 : vector<32x128xf32>
      %c0_12 = arith.constant 0 : index
      %c0_13 = arith.constant 0 : index
      %c0_14 = arith.constant 0 : index
      %32 = vector.load %arg5[%c0_12, %c0_13, %c0_14] : memref<1x8x128xf32, #tpu.memory_space<vmem>>, vector<1x8x128xf32>
      %33 = vector.shape_cast %32 : vector<1x8x128xf32> to vector<8x128xf32>
      %34 = vector.shape_cast %30 : vector<32x128xf32> to vector<4x8x128xf32>
      %cst_15 = arith.constant dense<0.000000e+00> : vector<8x128xf32>
      %35 = vector.multi_reduction <add>, %34, %cst_15 [0] : vector<4x8x128xf32> to vector<8x128xf32>
      %36 = arith.addf %33, %35 : vector<8x128xf32>
      %c0_16 = arith.constant 0 : index
      %c0_17 = arith.constant 0 : index
      %c0_18 = arith.constant 0 : index
      %37 = vector.load %arg5[%c0_16, %c0_17, %c0_18] : memref<1x8x128xf32, #tpu.memory_space<vmem>>, vector<1x8x128xf32>
      %38 = vector.shape_cast %37 : vector<1x8x128xf32> to vector<8x128xf32>
      %39 = vector.shape_cast %36 : vector<8x128xf32> to vector<1x8x128xf32>
      tpu.vector_store %arg5[%c0_16, %c0_17, %c0_18], %39 {strides = array<i32>} : memref<1x8x128xf32, #tpu.memory_space<vmem>>, vector<1x8x128xf32>,
      %c0_19 = arith.constant 0 : index
      %c0_20 = arith.constant 0 : index
      %c0_21 = arith.constant 0 : index
      %40 = vector.load %arg6[%c0_19, %c0_20, %c0_21] : memref<1x8x128xf32, #tpu.memory_space<vmem>>, vector<1x8x128xf32>
      %41 = vector.shape_cast %40 : vector<1x8x128xf32> to vector<8x128xf32>
      %42 = vector.shape_cast %31 : vector<32x128xf32> to vector<4x8x128xf32>
      %cst_22 = arith.constant dense<0.000000e+00> : vector<8x128xf32>
      %43 = vector.multi_reduction <add>, %42, %cst_22 [0] : vector<4x8x128xf32> to vector<8x128xf32>
      %44 = arith.addf %41, %43 : vector<8x128xf32>
      %c0_23 = arith.constant 0 : index
      %c0_24 = arith.constant 0 : index
      %c0_25 = arith.constant 0 : index
      %45 = vector.load %arg6[%c0_23, %c0_24, %c0_25] : memref<1x8x128xf32, #tpu.memory_space<vmem>>, vector<1x8x128xf32>
      %46 = vector.shape_cast %45 : vector<1x8x128xf32> to vector<8x128xf32>
      %47 = vector.shape_cast %44 : vector<8x128xf32> to vector<1x8x128xf32>
      tpu.vector_store %arg6[%c0_23, %c0_24, %c0_25], %47 {strides = array<i32>} : memref<1x8x128xf32, #tpu.memory_space<vmem>>, vector<1x8x128xf32>,
    } else {
    }
    %true = arith.constant true
    %10 = arith.xori %7, %true : i1
    %11 = arith.extui %10 : i1 to i32
    %c0_i32_4 = arith.constant 0 : i32
    %12 = arith.cmpi ne, %11, %c0_i32_4 : i32
    scf.if %12 {
      %13 = tpu.iota {dimensions = array<i32: 0>} : vector<32x128xi32>
      %14 = vector.broadcast %5 : i32 to vector<32x128xi32>
      %15 = arith.addi %14, %13 : vector<32x128xi32>
      %c32_i32_5 = arith.constant 32 : i32
      %16 = vector.broadcast %c32_i32_5 : i32 to vector<32x128xi32>
      %17 = arith.cmpi slt, %15, %16 : vector<32x128xi32>
      %c0 = arith.constant 0 : index
      %c0_6 = arith.constant 0 : index
      %18 = vector.load %arg2[%c0, %c0_6] : memref<32x128xbf16, #tpu.memory_space<vmem>>, vector<32x128xbf16>
      %19 = arith.extf %18 : vector<32x128xbf16> to vector<32x128xf32>
      %c0_7 = arith.constant 0 : index
      %c0_8 = arith.constant 0 : index
      %20 = vector.load %arg3[%c0_7, %c0_8] : memref<32x128xf32, #tpu.memory_space<vmem>>, vector<32x128xf32>
      %c0_9 = arith.constant 0 : index
      %c0_10 = arith.constant 0 : index
      %21 = vector.load %arg4[%c0_9, %c0_10] : memref<32x128xf32, #tpu.memory_space<vmem>>, vector<32x128xf32>
      %cst = arith.constant 0.000000e+00 : f32
      %22 = vector.broadcast %cst : f32 to vector<32x128xf32>
      %23 = arith.select %17, %19, %22 : vector<32x128xi1>, vector<32x128xf32>
      %cst_11 = arith.constant 0.000000e+00 : f32
      %24 = vector.broadcast %cst_11 : f32 to vector<32x128xf32>
      %25 = arith.select %17, %20, %24 : vector<32x128xi1>, vector<32x128xf32>
      %cst_12 = arith.constant 0.000000e+00 : f32
      %26 = vector.broadcast %cst_12 : f32 to vector<32x128xf32>
      %27 = arith.select %17, %21, %26 : vector<32x128xi1>, vector<32x128xf32>
      %28 = arith.subf %25, %27 : vector<32x128xf32>
      %29 = math.absf %28 : vector<32x128xf32>
      %30 = math.absf %27 : vector<32x128xf32>
      %31 = math.absf %25 : vector<32x128xf32>
      %32 = arith.addf %30, %31 : vector<32x128xf32>
      %33 = tpu.reciprocal %32 {approx = true} : vector<32x128xf32> -> vector<32x128xf32>
      %34 = arith.mulf %29, %33 : vector<32x128xf32>
      %35 = tpu.weird %34 : vector<32x128xf32> -> vector<32x128xi1>
      %cst_13 = arith.constant dense<true> : vector<32x128xi1>
      %36 = arith.xori %35, %cst_13 : vector<32x128xi1>
      %cst_14 = arith.constant 0.000000e+00 : f32
      %37 = vector.broadcast %cst_14 : f32 to vector<32x128xf32>
      %38 = arith.select %36, %34, %37 : vector<32x128xi1>, vector<32x128xf32>
      %cst_15 = arith.constant 1.000000e+00 : f32
      %39 = vector.broadcast %cst_15 : f32 to vector<32x128xf32>
      %40 = arith.addf %39, %38 : vector<32x128xf32>
      %41 = arith.mulf %29, %40 : vector<32x128xf32>
      %42 = arith.mulf %23, %41 : vector<32x128xf32>
      %c0_16 = arith.constant 0 : index
      %c0_17 = arith.constant 0 : index
      %c0_18 = arith.constant 0 : index
      %43 = vector.load %arg5[%c0_16, %c0_17, %c0_18] : memref<1x8x128xf32, #tpu.memory_space<vmem>>, vector<1x8x128xf32>
      %44 = vector.shape_cast %43 : vector<1x8x128xf32> to vector<8x128xf32>
      %45 = vector.shape_cast %41 : vector<32x128xf32> to vector<4x8x128xf32>
      %cst_19 = arith.constant dense<0.000000e+00> : vector<8x128xf32>
      %46 = vector.multi_reduction <add>, %45, %cst_19 [0] : vector<4x8x128xf32> to vector<8x128xf32>
      %47 = arith.addf %44, %46 : vector<8x128xf32>
      %c0_20 = arith.constant 0 : index
      %c0_21 = arith.constant 0 : index
      %c0_22 = arith.constant 0 : index
      %48 = vector.load %arg5[%c0_20, %c0_21, %c0_22] : memref<1x8x128xf32, #tpu.memory_space<vmem>>, vector<1x8x128xf32>
      %49 = vector.shape_cast %48 : vector<1x8x128xf32> to vector<8x128xf32>
      %50 = vector.shape_cast %47 : vector<8x128xf32> to vector<1x8x128xf32>
      tpu.vector_store %arg5[%c0_20, %c0_21, %c0_22], %50 {strides = array<i32>} : memref<1x8x128xf32, #tpu.memory_space<vmem>>, vector<1x8x128xf32>,
      %c0_23 = arith.constant 0 : index
      %c0_24 = arith.constant 0 : index
      %c0_25 = arith.constant 0 : index
      %51 = vector.load %arg6[%c0_23, %c0_24, %c0_25] : memref<1x8x128xf32, #tpu.memory_space<vmem>>, vector<1x8x128xf32>
      %52 = vector.shape_cast %51 : vector<1x8x128xf32> to vector<8x128xf32>
      %53 = vector.shape_cast %42 : vector<32x128xf32> to vector<4x8x128xf32>
      %cst_26 = arith.constant dense<0.000000e+00> : vector<8x128xf32>
      %54 = vector.multi_reduction <add>, %53, %cst_26 [0] : vector<4x8x128xf32> to vector<8x128xf32>
      %55 = arith.addf %52, %54 : vector<8x128xf32>
      %c0_27 = arith.constant 0 : index
      %c0_28 = arith.constant 0 : index
      %c0_29 = arith.constant 0 : index
      %56 = vector.load %arg6[%c0_27, %c0_28, %c0_29] : memref<1x8x128xf32, #tpu.memory_space<vmem>>, vector<1x8x128xf32>
      %57 = vector.shape_cast %56 : vector<1x8x128xf32> to vector<8x128xf32>
      %58 = vector.shape_cast %55 : vector<8x128xf32> to vector<1x8x128xf32>
      tpu.vector_store %arg6[%c0_27, %c0_28, %c0_29], %58 {strides = array<i32>} : memref<1x8x128xf32, #tpu.memory_space<vmem>>, vector<1x8x128xf32>,
    } else {
    }
    return
  }
  func.func @transform_0(%arg0: i32, %arg1: i32) -> (i32, i32) {
    %c1_i32 = arith.constant 1 : i32
    %0 = arith.muli %arg0, %c1_i32 : i32
    %1 = arith.addi %0, %arg1 : i32
    %c0_i32 = arith.constant 0 : i32
    %2 = arith.minsi %1, %c0_i32 : i32
    %c0_i32_0 = arith.constant 0 : i32
    %c0_i32_1 = arith.constant 0 : i32
    return %2, %c0_i32_0 : i32, i32
  }
  func.func @transform_1(%arg0: i32, %arg1: i32) -> (i32, i32) {
    %c1_i32 = arith.constant 1 : i32
    %0 = arith.muli %arg0, %c1_i32 : i32
    %1 = arith.addi %0, %arg1 : i32
    %c0_i32 = arith.constant 0 : i32
    %2 = arith.minsi %1, %c0_i32 : i32
    %c0_i32_0 = arith.constant 0 : i32
    %c0_i32_1 = arith.constant 0 : i32
    return %2, %c0_i32_0 : i32, i32
  }
  func.func @transform_2(%arg0: i32, %arg1: i32) -> (i32, i32) {
    %c1_i32 = arith.constant 1 : i32
    %0 = arith.muli %arg0, %c1_i32 : i32
    %1 = arith.addi %0, %arg1 : i32
    %c0_i32 = arith.constant 0 : i32
    %2 = arith.minsi %1, %c0_i32 : i32
    %c0_i32_0 = arith.constant 0 : i32
    %c0_i32_1 = arith.constant 0 : i32
    return %2, %c0_i32_0 : i32, i32
  }
  func.func @transform_3(%arg0: i32, %arg1: i32) -> (i32, i32, i32) {
    %c0_i32 = arith.constant 0 : i32
    %c0_i32_0 = arith.constant 0 : i32
    %c0_i32_1 = arith.constant 0 : i32
    return %arg0, %c0_i32, %c0_i32_0 : i32, i32, i32
  }
  func.func @transform_4(%arg0: i32, %arg1: i32) -> (i32, i32, i32) {
    %c0_i32 = arith.constant 0 : i32
    %c0_i32_0 = arith.constant 0 : i32
    %c0_i32_1 = arith.constant 0 : i32
    return %arg0, %c0_i32, %c0_i32_0 : i32, i32, i32
  }
}

</mosaic_0001>

<llo_original>
// kernel: tpu_custom_call.1
$region0: #{tpu_custom_call.1}
  #allocation0 [shape = 'u32[]', space=smem, size = 0x4, offset = 0x4, fixed_abs, tag = 'smem constant byte address 0x4 - core index']
  #allocation1 [shape = 'u32[72,128]{1,0:T(1,128)}', space=vmem, size = 0x9000, scoped, tag = 'internal scratch']
  %s0 = inlined_call_operand.hbm [shape: bf16[32,128], index: 0, kind: input, shape index: {}]
  %s1 = inlined_call_operand.hbm [shape: f32[32,128], index: 1, kind: input, shape index: {}]
  %s2 = inlined_call_operand.hbm [shape: f32[32,128], index: 2, kind: input, shape index: {}]
  %s3 = inlined_call_operand.hbm [shape: f32[1,8,128], index: 3, kind: output, shape index: {0}]
  %s4 = inlined_call_operand.hbm [shape: f32[1,8,128], index: 4, kind: output, shape index: {1}]
  %5 = xla_tuple %s3, %s4
  %s6 = sld [smem:[#allocation0]]
  $region54: #{tpu_custom_call.1} parent=0
    _
  %s8 = ssub.s32 1, %s6
  %s9 = scalar_select 0, %s8, %s6
  $region1: #{tpu_custom_call.1} parent=0
    #allocation2 [shape = 'u8[8192]{0}', space=vmem, size = 0x2000, scoped, tag = 'input window, operand 0, single buffered']
    #allocation3 [shape = 's32[1]{0}', space=sflag, size = 0x4, scoped, tag = 'scoped memory for tpu_custom_call.1']
    #allocation4 [shape = 's32[1]{0}', space=sflag, size = 0x4, scoped, tag = 'scoped memory for tpu_custom_call.1']
    #allocation5 [shape = 'u8[16384]{0}', space=vmem, size = 0x4000, scoped, tag = 'input window, operand 1, single buffered']
    #allocation6 [shape = 's32[1]{0}', space=sflag, size = 0x4, scoped, tag = 'scoped memory for tpu_custom_call.1']
    #allocation7 [shape = 'u8[16384]{0}', space=vmem, size = 0x4000, scoped, tag = 'input window, operand 2, single buffered']
    #allocation8 [shape = 'u8[4096]{0}', space=vmem, size = 0x1000, scoped, tag = 'output window, operand 0, single buffered']
    #allocation9 [shape = 'u8[4096]{0}', space=vmem, size = 0x1000, scoped, tag = 'output window, operand 1, single buffered']
    #allocation10 [shape = 's32[1]{0}', space=sflag, size = 0x4, scoped, tag = 'scoped memory for tpu_custom_call.1']
    %10 = vsyncpa [#allocation3], 0
    %11 = vsyncpa [#allocation6], 0
    %12 = vsyncpa [#allocation4], 0
    %13 = vsyncpa [#allocation10], 0
    // Predicated region
    $region2: #{tpu_custom_call.1} parent=1 // pred_check
      _
    $region3: #{tpu_custom_call.1} parent=1 // pred_check_branch
      %15 = sbr.rel (0) target = $region5
    $region4: #{tpu_custom_call.1} parent=1 // pred_region
      %s16 = sadd.s32 0, 0
      %p17 = scmp.lt.s32.totalorder %s16, 0
      %s18 = scalar_select %p17, %s16, 0
      %s19 = smul.u32 4, %s18
      %21 = vsyncadd [#allocation3], 0
      %s22 = smul.addr %s19, 4
      %s23 = scalar_lea.hbm %s0, %s22
      %s24 = sshll.u32 %s23, 4
      %s25 = int_to_ptr.hbm [resolvable:$true] %s24
      %s26 = sshll.u32 [#allocation2], 4
      %s27 = int_to_ptr.vmem [resolvable:$true] %s26
      %32 = dma.hbm_to_vmem [thread:$0]  %s25, 256, %s27, [#allocation3], 64, 64, 4
    $region5: #{tpu_custom_call.1} parent=1 // pred_fallthru
      _
    // Predicated region
    $region6: #{tpu_custom_call.1} parent=1 // pred_check
      _
    $region7: #{tpu_custom_call.1} parent=1 // pred_check_branch
      %34 = sbr.rel (0) target = $region9
    $region8: #{tpu_custom_call.1} parent=1 // pred_region
      %s35 = sadd.s32 0, 0
      %p36 = scmp.lt.s32.totalorder %s35, 0
      %s37 = scalar_select %p36, %s35, 0
      %s38 = smul.u32 4, %s37
      %40 = vsyncadd [#allocation6], 0
      %s41 = smul.addr %s38, 8
      %s42 = scalar_lea.hbm %s1, %s41
      %s43 = sshll.u32 %s42, 4
      %s44 = int_to_ptr.hbm [resolvable:$true] %s43
      %s45 = sshll.u32 [#allocation5], 4
      %s46 = int_to_ptr.vmem [resolvable:$true] %s45
      %51 = dma.hbm_to_vmem [thread:$0]  %s44, 512, %s46, [#allocation6], 128, 128, 8
    $region9: #{tpu_custom_call.1} parent=1 // pred_fallthru
      _
    // Predicated region
    $region10: #{tpu_custom_call.1} parent=1 // pred_check
      _
    $region11: #{tpu_custom_call.1} parent=1 // pred_check_branch
      %53 = sbr.rel (0) target = $region13
    $region12: #{tpu_custom_call.1} parent=1 // pred_region
      %s54 = sadd.s32 0, 0
      %p55 = scmp.lt.s32.totalorder %s54, 0
      %s56 = scalar_select %p55, %s54, 0
      %s57 = smul.u32 4, %s56
      %59 = vsyncadd [#allocation6], 0
      %s60 = smul.addr %s57, 8
      %s61 = scalar_lea.hbm %s2, %s60
      %s62 = sshll.u32 %s61, 4
      %s63 = int_to_ptr.hbm [resolvable:$true] %s62
      %s64 = sshll.u32 [#allocation7], 4
      %s65 = int_to_ptr.vmem [resolvable:$true] %s64
      %70 = dma.hbm_to_vmem [thread:$0]  %s63, 512, %s65, [#allocation6], 128, 128, 8
    $region13: #{tpu_custom_call.1} parent=1 // pred_fallthru
      _
    // Predicated region
    $region14: #{tpu_custom_call.1} parent=1 // pred_check
      _
    $region15: #{tpu_custom_call.1} parent=1 // pred_check_branch
      %72 = sbr.rel (0) target = $region17
    $region16: #{tpu_custom_call.1} parent=1 // pred_region
      %74 = dma.done [#allocation3], 256
    $region17: #{tpu_custom_call.1} parent=1 // pred_fallthru
      _
    // Predicated region
    $region18: #{tpu_custom_call.1} parent=1 // pred_check
      _
    $region19: #{tpu_custom_call.1} parent=1 // pred_check_branch
      %76 = sbr.rel (0) target = $region21
    $region20: #{tpu_custom_call.1} parent=1 // pred_region
      %78 = dma.done [#allocation6], 512
    $region21: #{tpu_custom_call.1} parent=1 // pred_fallthru
      _
    // Predicated region
    $region22: #{tpu_custom_call.1} parent=1 // pred_check
      _
    $region23: #{tpu_custom_call.1} parent=1 // pred_check_branch
      %80 = sbr.rel (0) target = $region25
    $region24: #{tpu_custom_call.1} parent=1 // pred_region
      %82 = dma.done [#allocation6], 512
    $region25: #{tpu_custom_call.1} parent=1 // pred_fallthru
      _
    %s83 = sadd.s32 0, 0
    %p84 = scmp.lt.s32.totalorder %s83, 0
    %s85 = scalar_select %p84, %s83, 0
    %s86 = smul.u32 4, %s85
    %s87 = sadd.s32 0, 0
    %p88 = scmp.lt.s32.totalorder %s87, 0
    %s89 = scalar_select %p88, %s87, 0
    %s90 = smul.u32 4, %s89
    %s91 = sadd.s32 0, 0
    %p92 = scmp.lt.s32.totalorder %s91, 0
    %s93 = scalar_select %p92, %s91, 0
    %s94 = smul.u32 4, %s93
    %p95 = scmp.eq.s32.totalorder 0, 0
    // Predicated region
    $region26: #{tpu_custom_call.1} parent=1 // pred_check
      %p96 = pneg %p95
    $region27: #{tpu_custom_call.1} parent=1 // pred_check_branch
      %98 = sbr.rel (%p96) target = $region29
    $region28: #{tpu_custom_call.1} parent=1 // pred_region
      %99 = vst [vmem:[#allocation8] sm:$0xff] 0.0
      %100 = vst [vmem:[#allocation9] sm:$0xff] 0.0
    $region29: #{tpu_custom_call.1} parent=1 // pred_fallthru
      _
    %s101 = sadd.s32 0, 0
    %s102 = smul.u32 %s101, 32
    %s103 = sadd.s32 %s102, 32
    %p104 = scmp.le.s32.totalorder %s103, 32
    // Predicated region
    $region30: #{tpu_custom_call.1} parent=1 // pred_check
      %p105 = pneg %p104
    $region31: #{tpu_custom_call.1} parent=1 // pred_check_branch
      %107 = sbr.rel (%p105) target = $region33
    $region32: #{tpu_custom_call.1} parent=1 // pred_region
      %v108 = vld [vmem:[#allocation2] sm:$0xf]
      %v109 = vld [vmem:[#allocation2 + $0x4] sm:$0xf]
      %v110 = vld [vmem:[#allocation2 + $0x8] sm:$0xf]
      %v111 = vld [vmem:[#allocation2 + $0xc] sm:$0xf]
      %v112 = vunpack.c.l.bf16 %v108
      %v113 = vunpack.c.l.bf16 %v109
      %v114 = vunpack.c.l.bf16 %v110
      %v115 = vunpack.c.l.bf16 %v111
      %v116 = vld [vmem:[#allocation5] sm:$0xff]
      %v117 = vld [vmem:[#allocation5 + $0x8] sm:$0xff]
      %v118 = vld [vmem:[#allocation5 + $0x10] sm:$0xff]
      %v119 = vld [vmem:[#allocation5 + $0x18] sm:$0xff]
      %v120 = vld [vmem:[#allocation7] sm:$0xff]
      %v121 = vld [vmem:[#allocation7 + $0x8] sm:$0xff]
      %v122 = vld [vmem:[#allocation7 + $0x10] sm:$0xff]
      %v123 = vld [vmem:[#allocation7 + $0x18] sm:$0xff]
      %v124 = vsub.f32 %v116, %v120
      %v125 = vsub.f32 %v117, %v121
      %v126 = vsub.f32 %v118, %v122
      %v127 = vsub.f32 %v119, %v123
      %v128 = vand.u32 2147483647, %v124
      %v129 = vand.u32 2147483647, %v125
      %v130 = vand.u32 2147483647, %v126
      %v131 = vand.u32 2147483647, %v127
      %v132 = vand.u32 2147483647, %v120
      %v133 = vand.u32 2147483647, %v121
      %v134 = vand.u32 2147483647, %v122
      %v135 = vand.u32 2147483647, %v123
      %v136 = vand.u32 2147483647, %v116
      %v137 = vand.u32 2147483647, %v117
      %v138 = vand.u32 2147483647, %v118
      %v139 = vand.u32 2147483647, %v119
      %v140 = vadd.f32 %v132, %v136
      %v141 = vadd.f32 %v133, %v137
      %v142 = vadd.f32 %v134, %v138
      %v143 = vadd.f32 %v135, %v139
      %v144 = vrcp.pop %v140
      %v145 = vrcp.pop %v141
      %v146 = vrcp.pop %v142
      %v147 = vrcp.pop %v143
      %v148 = vmul.f32 %v128, %v144
      %v149 = vmul.f32 %v129, %v145
      %v150 = vmul.f32 %v130, %v146
      %v151 = vmul.f32 %v131, %v147
      %vm152 = vweird.f32 %v148
      %vm153 = vweird.f32 %v149
      %vm154 = vweird.f32 %v150
      %vm155 = vweird.f32 %v151
      %vm156 = vmxor %vm152, 1
      %vm157 = vmxor %vm153, 1
      %vm158 = vmxor %vm154, 1
      %vm159 = vmxor %vm155, 1
      %v160 = vsel %vm156, %v148, 0.0
      %v161 = vsel %vm157, %v149, 0.0
      %v162 = vsel %vm158, %v150, 0.0
      %v163 = vsel %vm159, %v151, 0.0
      %v164 = vadd.f32 %v160, 1.0
      %v165 = vadd.f32 %v161, 1.0
      %v166 = vadd.f32 %v162, 1.0
      %v167 = vadd.f32 %v163, 1.0
      %v168 = vmul.f32 %v128, %v164
      %v169 = vmul.f32 %v129, %v165
      %v170 = vmul.f32 %v130, %v166
      %v171 = vmul.f32 %v131, %v167
      %v172 = vmul.f32 %v112, %v168
      %v173 = vmul.f32 %v113, %v169
      %v174 = vmul.f32 %v114, %v170
      %v175 = vmul.f32 %v115, %v171
      %v176 = vld [vmem:[#allocation8] sm:$0xff]
      %v177 = vadd.f32 %v168, %v169
      %v178 = vadd.f32 %v177, %v170
      %v179 = vadd.f32 %v178, %v171
      %v180 = vadd.f32 %v176, %v179
      %181 = vst [vmem:[#allocation8] sm:$0xff] %v180
      %v182 = vld [vmem:[#allocation9] sm:$0xff]
      %v183 = vadd.f32 %v172, %v173
      %v184 = vadd.f32 %v183, %v174
      %v185 = vadd.f32 %v184, %v175
      %v186 = vadd.f32 %v182, %v185
      %187 = vst [vmem:[#allocation9] sm:$0xff] %v186
    $region33: #{tpu_custom_call.1} parent=1 // pred_fallthru
      _
    %p188 = scmp.gt.s32.totalorder %s103, 32
    // Predicated region
    $region34: #{tpu_custom_call.1} parent=1 // pred_check
      %p189 = pneg %p188
    $region35: #{tpu_custom_call.1} parent=1 // pred_check_branch
      %191 = sbr.rel (%p189) target = $region37
    $region36: #{tpu_custom_call.1} parent=1 // pred_region
      %v192 = vlaneseq
      %v193 = vshrl.u32 %v192, 7
      %v194 = vadd.s32 %v193, 8
      %v195 = vadd.s32 %v193, 16
      %v196 = vadd.s32 %v193, 24
      %v197 = vstv %s102
      %v198 = vadd.s32 %v197, %v193
      %v199 = vadd.s32 %v197, %v194
      %v200 = vadd.s32 %v197, %v195
      %v201 = vadd.s32 %v197, %v196
      %vm202 = vcmp.lt.s32.totalorder %v198, 32
      %vm203 = vcmp.lt.s32.totalorder %v199, 32
      %vm204 = vcmp.lt.s32.totalorder %v200, 32
      %vm205 = vcmp.lt.s32.totalorder %v201, 32
      %v206 = vld [vmem:[#allocation2] sm:$0xf]
      %v207 = vld [vmem:[#allocation2 + $0x4] sm:$0xf]
      %v208 = vld [vmem:[#allocation2 + $0x8] sm:$0xf]
      %v209 = vld [vmem:[#allocation2 + $0xc] sm:$0xf]
      %v210 = vunpack.c.l.bf16 %v206
      %v211 = vunpack.c.l.bf16 %v207
      %v212 = vunpack.c.l.bf16 %v208
      %v213 = vunpack.c.l.bf16 %v209
      %v214 = vld [vmem:[#allocation5] sm:$0xff]
      %v215 = vld [vmem:[#allocation5 + $0x8] sm:$0xff]
      %v216 = vld [vmem:[#allocation5 + $0x10] sm:$0xff]
      %v217 = vld [vmem:[#allocation5 + $0x18] sm:$0xff]
      %v218 = vld [vmem:[#allocation7] sm:$0xff]
      %v219 = vld [vmem:[#allocation7 + $0x8] sm:$0xff]
      %v220 = vld [vmem:[#allocation7 + $0x10] sm:$0xff]
      %v221 = vld [vmem:[#allocation7 + $0x18] sm:$0xff]
      %v222 = vsel %vm202, %v210, 0.0
      %v223 = vsel %vm203, %v211, 0.0
      %v224 = vsel %vm204, %v212, 0.0
      %v225 = vsel %vm205, %v213, 0.0
      %v226 = vsel %vm202, %v214, 0.0
      %v227 = vsel %vm203, %v215, 0.0
      %v228 = vsel %vm204, %v216, 0.0
      %v229 = vsel %vm205, %v217, 0.0
      %v230 = vsel %vm202, %v218, 0.0
      %v231 = vsel %vm203, %v219, 0.0
      %v232 = vsel %vm204, %v220, 0.0
      %v233 = vsel %vm205, %v221, 0.0
      %v234 = vsub.f32 %v226, %v230
      %v235 = vsub.f32 %v227, %v231
      %v236 = vsub.f32 %v228, %v232
      %v237 = vsub.f32 %v229, %v233
      %v238 = vand.u32 2147483647, %v234
      %v239 = vand.u32 2147483647, %v235
      %v240 = vand.u32 2147483647, %v236
      %v241 = vand.u32 2147483647, %v237
      %v242 = vand.u32 2147483647, %v230
      %v243 = vand.u32 2147483647, %v231
      %v244 = vand.u32 2147483647, %v232
      %v245 = vand.u32 2147483647, %v233
      %v246 = vand.u32 2147483647, %v226
      %v247 = vand.u32 2147483647, %v227
      %v248 = vand.u32 2147483647, %v228
      %v249 = vand.u32 2147483647, %v229
      %v250 = vadd.f32 %v242, %v246
      %v251 = vadd.f32 %v243, %v247
      %v252 = vadd.f32 %v244, %v248
      %v253 = vadd.f32 %v245, %v249
      %v254 = vrcp.pop %v250
      %v255 = vrcp.pop %v251
      %v256 = vrcp.pop %v252
      %v257 = vrcp.pop %v253
      %v258 = vmul.f32 %v238, %v254
      %v259 = vmul.f32 %v239, %v255
      %v260 = vmul.f32 %v240, %v256
      %v261 = vmul.f32 %v241, %v257
      %vm262 = vweird.f32 %v258
      %vm263 = vweird.f32 %v259
      %vm264 = vweird.f32 %v260
      %vm265 = vweird.f32 %v261
      %vm266 = vmxor %vm262, 1
      %vm267 = vmxor %vm263, 1
      %vm268 = vmxor %vm264, 1
      %vm269 = vmxor %vm265, 1
      %v270 = vsel %vm266, %v258, 0.0
      %v271 = vsel %vm267, %v259, 0.0
      %v272 = vsel %vm268, %v260, 0.0
      %v273 = vsel %vm269, %v261, 0.0
      %v274 = vadd.f32 %v270, 1.0
      %v275 = vadd.f32 %v271, 1.0
      %v276 = vadd.f32 %v272, 1.0
      %v277 = vadd.f32 %v273, 1.0
      %v278 = vmul.f32 %v238, %v274
      %v279 = vmul.f32 %v239, %v275
      %v280 = vmul.f32 %v240, %v276
      %v281 = vmul.f32 %v241, %v277
      %v282 = vmul.f32 %v222, %v278
      %v283 = vmul.f32 %v223, %v279
      %v284 = vmul.f32 %v224, %v280
      %v285 = vmul.f32 %v225, %v281
      %v286 = vld [vmem:[#allocation8] sm:$0xff]
      %v287 = vadd.f32 %v278, %v279
      %v288 = vadd.f32 %v287, %v280
      %v289 = vadd.f32 %v288, %v281
      %v290 = vadd.f32 %v286, %v289
      %291 = vst [vmem:[#allocation8] sm:$0xff] %v290
      %v292 = vld [vmem:[#allocation9] sm:$0xff]
      %v293 = vadd.f32 %v282, %v283
      %v294 = vadd.f32 %v293, %v284
      %v295 = vadd.f32 %v294, %v285
      %v296 = vadd.f32 %v292, %v295
      %297 = vst [vmem:[#allocation9] sm:$0xff] %v296
    $region37: #{tpu_custom_call.1} parent=1 // pred_fallthru
      _
    // Predicated region
    $region38: #{tpu_custom_call.1} parent=1 // pred_check
      _
    $region39: #{tpu_custom_call.1} parent=1 // pred_check_branch
      %299 = sbr.rel (0) target = $region41
    $region40: #{tpu_custom_call.1} parent=1 // pred_region
      %301 = vsyncadd [#allocation4], 0
      %s303 = sshll.u32 [#allocation8], 4
      %s304 = int_to_ptr.vmem [resolvable:$true] %s303
      %s305 = sshll.u32 %s3, 4
      %s306 = int_to_ptr.hbm [resolvable:$true] %s305
      %308 = dma.vmem_to_hbm [thread:$0]  %s304, 128, %s306, [#allocation4]
    $region41: #{tpu_custom_call.1} parent=1 // pred_fallthru
      _
    // Predicated region
    $region42: #{tpu_custom_call.1} parent=1 // pred_check
      _
    $region43: #{tpu_custom_call.1} parent=1 // pred_check_branch
      %310 = sbr.rel (0) target = $region45
    $region44: #{tpu_custom_call.1} parent=1 // pred_region
      %312 = vsyncadd [#allocation10], 0
      %s314 = sshll.u32 [#allocation9], 4
      %s315 = int_to_ptr.vmem [resolvable:$true] %s314
      %s316 = sshll.u32 %s4, 4
      %s317 = int_to_ptr.hbm [resolvable:$true] %s316
      %319 = dma.vmem_to_hbm [thread:$0]  %s315, 128, %s317, [#allocation10]
    $region45: #{tpu_custom_call.1} parent=1 // pred_fallthru
      _
    // Predicated region
    $region46: #{tpu_custom_call.1} parent=1 // pred_check
      _
    $region47: #{tpu_custom_call.1} parent=1 // pred_check_branch
      %321 = sbr.rel (0) target = $region49
    $region48: #{tpu_custom_call.1} parent=1 // pred_region
      %323 = dma.done [#allocation4], 128
    $region49: #{tpu_custom_call.1} parent=1 // pred_fallthru
      _
    // Predicated region
    $region50: #{tpu_custom_call.1} parent=1 // pred_check
      _
    $region51: #{tpu_custom_call.1} parent=1 // pred_check_branch
      %325 = sbr.rel (0) target = $region53
    $region52: #{tpu_custom_call.1} parent=1 // pred_region
      %327 = dma.done [#allocation10], 128
    $region53: #{tpu_custom_call.1} parent=1 // pred_fallthru
      _
    %328 = vsyncpa [#allocation3], 1
    %329 = vsyncpa [#allocation6], 1
    %330 = vsyncpa [#allocation4], 1
    %331 = vsyncpa [#allocation10], 1

</llo_original>
